<compile_context>
chip_gen: v7x
topology: tpu7x:2x2x1
jax: 0.10.0
libtpu: 0.0.40
codegen_flags: <defaults>
</compile_context>

<pallas_src>
import functools
import math

import jax
import jax.numpy as jnp
from jax.experimental import pallas as pl
from jax.experimental.pallas import tpu as pltpu


def _round_up(x, m):
    return ((x + m - 1) // m) * m


def _ppo_fused_kernel(x_ref, w1_ref, w2_ref, w3_ref, b_ref, out_ref, *,
                      output_size, h1, h2, n_pad):
    """Fused actor+critic 3-layer MLP with block-diagonal packed weights.

    x_ref : (TB, K)            concat([inputs, global_inputs]) padded to K
    w1_ref: (K, h1)            block-diag [actor W1 | critic W1]
    w2_ref: (h1, h2)           block-diag
    w3_ref: (h2, n_pad)        block-diag; actor logits -> lanes [0, out),
                               critic value -> lane `output_size`
    b_ref : (3, max(h1,n_pad)) packed biases (rows: b1, b2, b3)
    out_ref: (TB, 2*n_pad)     [:, :n_pad]  = logits/critic slab
                               [:, n_pad:]  = softmax(actor logits) (masked)
    """
    x = x_ref[...]
    b_all = b_ref[...]
    b1 = b_all[0:1, 0:h1]
    b2 = b_all[1:2, 0:h2]
    b3 = b_all[2:3, 0:n_pad]

    a1 = jnp.maximum(
        jnp.dot(x, w1_ref[...], preferred_element_type=jnp.float32) + b1, 0.0)
    a2 = jnp.maximum(
        jnp.dot(a1, w2_ref[...], preferred_element_type=jnp.float32) + b2, 0.0)
    h3 = jnp.dot(a2, w3_ref[...], preferred_element_type=jnp.float32) + b3

    # Softmax over the actor logit lanes only (lanes >= output_size hold the
    # critic value / padding and are masked out of the reduction).
    lane = jax.lax.broadcasted_iota(jnp.int32, h3.shape, 1)
    mask = lane < output_size
    masked_logits = jnp.where(mask, h3, -jnp.inf)
    m = jnp.max(masked_logits, axis=-1, keepdims=True)
    e = jnp.exp(masked_logits - m)            # masked lanes -> exp(-inf) = 0
    denom = jnp.sum(e, axis=-1, keepdims=True)
    # EUP approx reciprocal + one Newton step (free VALU) -> ~f32 accuracy.
    r = pl.reciprocal(denom, approx=True)
    r = r * (2.0 - denom * r)
    soft = e * r

    out_ref[:, 0:n_pad] = h3
    out_ref[:, n_pad:2 * n_pad] = soft


def _init_linear(key, fan_in, fan_out):
    # Mimic torch.nn.Linear default init: U(-1/sqrt(fan_in), 1/sqrt(fan_in))
    kw, kb = jax.random.split(key)
    bound = 1.0 / math.sqrt(fan_in)
    w = jax.random.uniform(kw, (fan_in, fan_out), jnp.float32, -bound, bound)
    b = jax.random.uniform(kb, (fan_out,), jnp.float32, -bound, bound)
    return w, b


class PPOPallas:
    """JAX/Pallas re-implementation of the PyTorch PPO module's forward pass."""

    H1A = 128  # actor hidden sizes
    H2A = 64
    H1C = 128  # critic hidden sizes
    H2C = 64

    def __init__(self, name, input_size, global_input_size, output_size, lr, key):
        self.name = name
        self.input_size = input_size
        self.global_size = global_input_size
        self.output_size = output_size
        self.lr = lr  # TODO(synk): Adam optimizer / train() not implemented (forward-only).

        keys = jax.random.split(key, 6)
        a_w1, a_b1 = _init_linear(keys[0], input_size, self.H1A)
        a_w2, a_b2 = _init_linear(keys[1], self.H1A, self.H2A)
        a_w3, a_b3 = _init_linear(keys[2], self.H2A, output_size)
        c_w1, c_b1 = _init_linear(keys[3], global_input_size, self.H1C)
        c_w2, c_b2 = _init_linear(keys[4], self.H1C, self.H2C)
        c_w3, c_b3 = _init_linear(keys[5], self.H2C, 1)
        # raw params kept for the pure-JAX reference check
        self.actor_params = (a_w1, a_b1, a_w2, a_b2, a_w3, a_b3)
        self.critic_params = (c_w1, c_b1, c_w2, c_b2, c_w3, c_b3)

        # ----- block-diagonal fused weights (one kernel for actor + critic) -----
        self.k_in = _round_up(input_size + global_input_size, 128)
        self.h1 = self.H1A + self.H1C                       # 256
        self.h2 = self.H2A + self.H2C                       # 128
        self.n_pad = _round_up(output_size + 1, 128)        # lane-dense output slab
        self.bw = max(self.h1, self.n_pad)
        ia, ic = input_size, global_input_size

        w1p = jnp.zeros((self.k_in, self.h1), jnp.float32)
        w1p = w1p.at[:ia, :self.H1A].set(a_w1)
        w1p = w1p.at[ia:ia + ic, self.H1A:].set(c_w1)

        w2p = jnp.zeros((self.h1, self.h2), jnp.float32)
        w2p = w2p.at[:self.H1A, :self.H2A].set(a_w2)
        w2p = w2p.at[self.H1A:, self.H2A:].set(c_w2)

        w3p = jnp.zeros((self.h2, self.n_pad), jnp.float32)
        w3p = w3p.at[:self.H2A, :output_size].set(a_w3)
        w3p = w3p.at[self.H2A:, output_size:output_size + 1].set(c_w3)

        bias = jnp.zeros((3, self.bw), jnp.float32)
        bias = bias.at[0, :self.H1A].set(a_b1)
        bias = bias.at[0, self.H1A:self.h1].set(c_b1)
        bias = bias.at[1, :self.H2A].set(a_b2)
        bias = bias.at[1, self.H2A:self.h2].set(c_b2)
        bias = bias.at[2, :output_size].set(a_b3)
        bias = bias.at[2, output_size].set(c_b3[0])

        self.w1p, self.w2p, self.w3p, self.bias_pack = w1p, w2p, w3p, bias

    def _fused_call(self, inputs, global_inputs):
        B = inputs.shape[0]
        ia, ic = self.input_size, self.global_size
        if global_inputs is None:
            # critic branch unused on this path; feed zeros (output is ignored)
            global_inputs = jnp.zeros((B, ic), jnp.float32)

        # batch tile: multiple of 8 sublanes; grid over batch for large rollouts
        tb = 256 if B > 256 else _round_up(max(B, 1), 8)
        bp = _round_up(B, tb)
        x_cat = jnp.zeros((bp, self.k_in), jnp.float32)
        x_cat = x_cat.at[:B, :ia].set(inputs.astype(jnp.float32))
        x_cat = x_cat.at[:B, ia:ia + ic].set(global_inputs.astype(jnp.float32))

        kernel = functools.partial(
            _ppo_fused_kernel, output_size=self.output_size,
            h1=self.h1, h2=self.h2, n_pad=self.n_pad)

        out = pl.pallas_call(
            kernel,
            out_shape=jax.ShapeDtypeStruct((bp, 2 * self.n_pad), jnp.float32),
            grid_spec=pltpu.PrefetchScalarGridSpec(
                num_scalar_prefetch=0,
                grid=(bp // tb,),
                in_specs=[
                    pl.BlockSpec((tb, self.k_in), lambda i: (i, 0)),
                    pl.BlockSpec((self.k_in, self.h1), lambda i: (0, 0)),
                    pl.BlockSpec((self.h1, self.h2), lambda i: (0, 0)),
                    pl.BlockSpec((self.h2, self.n_pad), lambda i: (0, 0)),
                    pl.BlockSpec((3, self.bw), lambda i: (0, 0)),
                ],
                out_specs=pl.BlockSpec((tb, 2 * self.n_pad), lambda i: (i, 0)),
            ),
            compiler_params=pltpu.CompilerParams(
                dimension_semantics=("parallel",)),
        )(x_cat, self.w1p, self.w2p, self.w3p, self.bias_pack)
        return out[:B]

    def forward(self, inputs, target=None, global_inputs=None):
        needs_critic = (not target) or target == 'get critic'
        if needs_critic and global_inputs is None:
            raise ValueError(
                "global_inputs is required when the critic output is requested "
                "(target=None or target='get critic').")
        packed = self._fused_call(inputs, global_inputs)
        out = self.output_size
        logits = packed[:, :out]                               # raw actor output
        critic_val = packed[:, out:out + 1]                    # critic value
        policy_soft = packed[:, self.n_pad:self.n_pad + out]   # softmax(logits)
        if not target:
            return logits, critic_val
        elif target == 'get critic':
            return critic_val
        elif target == 'get policy':
            return policy_soft

    __call__ = forward


def _reference_mlp3(x, params, apply_softmax=False):
    w1, b1, w2, b2, w3, b3 = params
    h1 = jnp.maximum(x @ w1 + b1, 0.0)
    h2 = jnp.maximum(h1 @ w2 + b2, 0.0)
    out = h2 @ w3 + b3
    if apply_softmax:
        out = jax.nn.softmax(out, axis=-1)
    return out


if __name__ == "__main__":
    key = jax.random.PRNGKey(0)
    k_model, k_x, k_g = jax.random.split(key, 3)

    batch = 8
    input_size = 32
    global_input_size = 48
    output_size = 8

    model = PPOPallas("agent0", input_size, global_input_size, output_size,
                      lr=1e-3, key=k_model)

    x = jax.random.normal(k_x, (batch, input_size), jnp.float32)
    g = jax.random.normal(k_g, (batch, global_input_size), jnp.float32)

    # Default path: (raw policy logits, critic value) — matches PyTorch semantics.
    policy_logits, critic_val = model(x, target=None, global_inputs=g)
    policy_soft = model(x, target='get policy')
    critic_only = model(x, target='get critic', global_inputs=g)

    jax.block_until_ready((policy_logits, critic_val, policy_soft, critic_only))

    # sanity check vs plain-JAX reference on the unpacked weights
    ref_policy = _reference_mlp3(x, model.actor_params)
    ref_critic = _reference_mlp3(g, model.critic_params)
    ref_soft = _reference_mlp3(x, model.actor_params, apply_softmax=True)

    assert policy_logits.shape == (batch, output_size)
    assert critic_val.shape == (batch, 1)
    assert policy_soft.shape == (batch, output_size)
    assert jnp.allclose(policy_logits, ref_policy, atol=1e-4, rtol=1e-4)
    assert jnp.allclose(critic_val, ref_critic, atol=1e-4, rtol=1e-4)
    assert jnp.allclose(policy_soft, ref_soft, atol=1e-3, rtol=1e-3)
    assert jnp.allclose(critic_only, ref_critic, atol=1e-4, rtol=1e-4)

    print("KERNEL_OK")
</pallas_src>

<mosaic_0001>
module attributes {stable_mosaic.version = 11 : i64} {
  func.func @_ppo_fused_kernel(%arg0: i32, %arg1: memref<8x128xf32, #tpu.memory_space<vmem>>, %arg2: memref<128x256xf32, #tpu.memory_space<vmem>>, %arg3: memref<256x128xf32, #tpu.memory_space<vmem>>, %arg4: memref<128x128xf32, #tpu.memory_space<vmem>>, %arg5: memref<3x256xf32, #tpu.memory_space<vmem>>, %arg6: memref<8x256xf32, #tpu.memory_space<vmem>>) attributes {dimension_semantics = [#tpu.dimension_semantics<parallel>], iteration_bounds = array<i64: 1>, scalar_prefetch = 0 : i64, scratch_operands = 0 : i64, tpu.core_type = #tpu.core_type<tc>, window_params = [{transform_indices = @transform_0, window_bounds = array<i64: 8, 128>}, {pipeline_mode = #tpu.pipeline_mode<synchronous>, transform_indices = @transform_1, window_bounds = array<i64: 128, 256>}, {pipeline_mode = #tpu.pipeline_mode<synchronous>, transform_indices = @transform_2, window_bounds = array<i64: 256, 128>}, {pipeline_mode = #tpu.pipeline_mode<synchronous>, transform_indices = @transform_3, window_bounds = array<i64: 128, 128>}, {pipeline_mode = #tpu.pipeline_mode<synchronous>, transform_indices = @transform_4, window_bounds = array<i64: 3, 256>}, {transform_indices = @transform_5, window_bounds = array<i64: 8, 256>}]} {
    %c0 = arith.constant 0 : index
    %c0_0 = arith.constant 0 : index
    %0 = vector.load %arg1[%c0, %c0_0] : memref<8x128xf32, #tpu.memory_space<vmem>>, vector<8x128xf32>
    %c0_1 = arith.constant 0 : index
    %c0_2 = arith.constant 0 : index
    %1 = vector.load %arg5[%c0_1, %c0_2] : memref<3x256xf32, #tpu.memory_space<vmem>>, vector<3x256xf32>
    %2 = vector.extract_strided_slice %1 {offsets = [0, 0], sizes = [1, 256], strides = [1, 1]} : vector<3x256xf32> to vector<1x256xf32>
    %3 = vector.extract_strided_slice %1 {offsets = [1, 0], sizes = [1, 128], strides = [1, 1]} : vector<3x256xf32> to vector<1x128xf32>
    %4 = vector.extract_strided_slice %1 {offsets = [2, 0], sizes = [1, 128], strides = [1, 1]} : vector<3x256xf32> to vector<1x128xf32>
    %c0_3 = arith.constant 0 : index
    %c0_4 = arith.constant 0 : index
    %5 = vector.load %arg2[%c0_3, %c0_4] : memref<128x256xf32, #tpu.memory_space<vmem>>, vector<128x256xf32>
    %cst = arith.constant dense<0.000000e+00> : vector<8x256xf32>
    %6 = tpu.matmul %0, %5, %cst {dimension_numbers = #tpu.dot_dimension_numbers<[1], [0], [0], [1], [0, 0, 1, 1], [], []>} : vector<8x128xf32>, vector<128x256xf32>, vector<8x256xf32> -> vector<8x256xf32>
    %7 = vector.broadcast %2 : vector<1x256xf32> to vector<8x256xf32>
    %8 = arith.addf %6, %7 : vector<8x256xf32>
    %cst_5 = arith.constant 0.000000e+00 : f32
    %9 = vector.broadcast %cst_5 : f32 to vector<8x256xf32>
    %10 = arith.maximumf %8, %9 : vector<8x256xf32>
    %c0_6 = arith.constant 0 : index
    %c0_7 = arith.constant 0 : index
    %11 = vector.load %arg3[%c0_6, %c0_7] : memref<256x128xf32, #tpu.memory_space<vmem>>, vector<256x128xf32>
    %cst_8 = arith.constant dense<0.000000e+00> : vector<8x128xf32>
    %12 = tpu.matmul %10, %11, %cst_8 {dimension_numbers = #tpu.dot_dimension_numbers<[1], [0], [0], [1], [0, 0, 1, 1], [], []>} : vector<8x256xf32>, vector<256x128xf32>, vector<8x128xf32> -> vector<8x128xf32>
    %13 = vector.broadcast %3 : vector<1x128xf32> to vector<8x128xf32>
    %14 = arith.addf %12, %13 : vector<8x128xf32>
    %cst_9 = arith.constant 0.000000e+00 : f32
    %15 = vector.broadcast %cst_9 : f32 to vector<8x128xf32>
    %16 = arith.maximumf %14, %15 : vector<8x128xf32>
    %c0_10 = arith.constant 0 : index
    %c0_11 = arith.constant 0 : index
    %17 = vector.load %arg4[%c0_10, %c0_11] : memref<128x128xf32, #tpu.memory_space<vmem>>, vector<128x128xf32>
    %cst_12 = arith.constant dense<0.000000e+00> : vector<8x128xf32>
    %18 = tpu.matmul %16, %17, %cst_12 {dimension_numbers = #tpu.dot_dimension_numbers<[1], [0], [0], [1], [0, 0, 1, 1], [], []>} : vector<8x128xf32>, vector<128x128xf32>, vector<8x128xf32> -> vector<8x128xf32>
    %19 = vector.broadcast %4 : vector<1x128xf32> to vector<8x128xf32>
    %20 = arith.addf %18, %19 : vector<8x128xf32>
    %21 = tpu.iota {dimensions = array<i32: 1>} : vector<8x128xi32>
    %c8_i32 = arith.constant 8 : i32
    %22 = vector.broadcast %c8_i32 : i32 to vector<8x128xi32>
    %23 = arith.cmpi slt, %21, %22 : vector<8x128xi32>
    %cst_13 = arith.constant 0xFF800000 : f32
    %24 = vector.broadcast %cst_13 : f32 to vector<8x128xf32>
    %25 = arith.select %23, %20, %24 : vector<8x128xi1>, vector<8x128xf32>
    %cst_14 = arith.constant dense<0xFF800000> : vector<8xf32>
    %26 = vector.multi_reduction <maximumf>, %25, %cst_14 [1] : vector<8x128xf32> to vector<8xf32>
    %27 = vector.shape_cast %26 : vector<8xf32> to vector<8x1xf32>
    %28 = vector.broadcast %27 : vector<8x1xf32> to vector<8x128xf32>
    %29 = arith.subf %25, %28 : vector<8x128xf32>
    %30 = math.exp %29 : vector<8x128xf32>
    %cst_15 = arith.constant dense<0.000000e+00> : vector<8xf32>
    %31 = vector.multi_reduction <add>, %30, %cst_15 [1] : vector<8x128xf32> to vector<8xf32>
    %32 = vector.shape_cast %31 : vector<8xf32> to vector<8x1xf32>
    %33 = tpu.reciprocal %32 {approx = true} : vector<8x1xf32> -> vector<8x1xf32>
    %34 = arith.mulf %32, %33 : vector<8x1xf32>
    %cst_16 = arith.constant 2.000000e+00 : f32
    %35 = vector.broadcast %cst_16 : f32 to vector<8x1xf32>
    %36 = arith.subf %35, %34 : vector<8x1xf32>
    %37 = arith.mulf %33, %36 : vector<8x1xf32>
    %38 = vector.broadcast %37 : vector<8x1xf32> to vector<8x128xf32>
    %39 = arith.mulf %30, %38 : vector<8x128xf32>
    %c0_17 = arith.constant 0 : index
    %c0_18 = arith.constant 0 : index
    %40 = vector.load %arg6[%c0_17, %c0_18] : memref<8x256xf32, #tpu.memory_space<vmem>>, vector<8x128xf32>
    tpu.vector_store %arg6[%c0_17, %c0_18], %20 {strides = array<i32>} : memref<8x256xf32, #tpu.memory_space<vmem>>, vector<8x128xf32>,
    %c0_19 = arith.constant 0 : index
    %c128 = arith.constant 128 : index
    %41 = vector.load %arg6[%c0_19, %c128] : memref<8x256xf32, #tpu.memory_space<vmem>>, vector<8x128xf32>
    tpu.vector_store %arg6[%c0_19, %c128], %39 {strides = array<i32>} : memref<8x256xf32, #tpu.memory_space<vmem>>, vector<8x128xf32>,
    return
  }
  func.func @transform_0(%arg0: i32) -> (i32, i32) {
    %c0_i32 = arith.constant 0 : i32
    %c0_i32_0 = arith.constant 0 : i32
    return %arg0, %c0_i32 : i32, i32
  }
  func.func @transform_1(%arg0: i32) -> (i32, i32) {
    %c0_i32 = arith.constant 0 : i32
    %c0_i32_0 = arith.constant 0 : i32
    %c0_i32_1 = arith.constant 0 : i32
    return %c0_i32, %c0_i32_0 : i32, i32
  }
  func.func @transform_2(%arg0: i32) -> (i32, i32) {
    %c0_i32 = arith.constant 0 : i32
    %c0_i32_0 = arith.constant 0 : i32
    %c0_i32_1 = arith.constant 0 : i32
    return %c0_i32, %c0_i32_0 : i32, i32
  }
  func.func @transform_3(%arg0: i32) -> (i32, i32) {
    %c0_i32 = arith.constant 0 : i32
    %c0_i32_0 = arith.constant 0 : i32
    %c0_i32_1 = arith.constant 0 : i32
    return %c0_i32, %c0_i32_0 : i32, i32
  }
  func.func @transform_4(%arg0: i32) -> (i32, i32) {
    %c0_i32 = arith.constant 0 : i32
    %c0_i32_0 = arith.constant 0 : i32
    %c0_i32_1 = arith.constant 0 : i32
    return %c0_i32, %c0_i32_0 : i32, i32
  }
  func.func @transform_5(%arg0: i32) -> (i32, i32) {
    %c0_i32 = arith.constant 0 : i32
    %c0_i32_0 = arith.constant 0 : i32
    return %arg0, %c0_i32 : i32, i32
  }
}

</mosaic_0001>

<llo_original>
// kernel: tpu_custom_call.1
$region0: #{tpu_custom_call.1}
  #allocation0 [shape = 'u32[]', space=smem, size = 0x4, offset = 0x4, fixed_abs, tag = 'smem constant byte address 0x4 - core index']
  #allocation1 [shape = 'u32[144,128]{1,0:T(1,128)}', space=vmem, size = 0x12000, scoped, tag = 'internal scratch']
  %s0 = inlined_call_operand.hbm [shape: f32[8,128], index: 0, kind: input, shape index: {}]
  %s1 = inlined_call_operand.hbm [shape: f32[128,256], index: 1, kind: input, shape index: {}]
  %s2 = inlined_call_operand.hbm [shape: f32[256,128], index: 2, kind: input, shape index: {}]
  %s3 = inlined_call_operand.hbm [shape: f32[128,128], index: 3, kind: input, shape index: {}]
  %s4 = inlined_call_operand.vmem [shape: f32[3,256], index: 4, kind: input, shape index: {}]
  %s5 = inlined_call_operand.hbm [shape: f32[8,256], index: 5, kind: output, shape index: {}]
  %s6 = sld [smem:[#allocation0]]
  $region46: #{tpu_custom_call.1} parent=0
    _
  %s8 = ssub.s32 1, %s6
  %s9 = scalar_select 0, %s8, %s6
  $region1: #{tpu_custom_call.1} parent=0
    #allocation2 [shape = 'u8[4096]{0}', space=vmem, size = 0x1000, scoped, tag = 'input window, operand 0, single buffered']
    #allocation3 [shape = 's32[1]{0}', space=sflag, size = 0x4, scoped, tag = 'scoped memory for tpu_custom_call.1']
    #allocation4 [shape = 's32[1]{0}', space=sflag, size = 0x4, scoped, tag = 'scoped memory for tpu_custom_call.1']
    #allocation5 [shape = 'u8[131072]{0}', space=vmem, size = 0x20000, scoped, tag = 'input window, operand 1, single buffered']
    #allocation6 [shape = 's32[1]{0}', space=sflag, size = 0x4, scoped, tag = 'scoped memory for tpu_custom_call.1']
    #allocation7 [shape = 'u8[131072]{0}', space=vmem, size = 0x20000, scoped, tag = 'input window, operand 2, single buffered']
    #allocation8 [shape = 'u8[65536]{0}', space=vmem, size = 0x10000, scoped, tag = 'input window, operand 3, single buffered']
    #allocation9 [shape = 's32[1]{0}', space=sflag, size = 0x4, scoped, tag = 'scoped memory for tpu_custom_call.1']
    #allocation10 [shape = 'u8[8192]{0}', space=vmem, size = 0x2000, scoped, tag = 'output window, operand 0, single buffered']
    %10 = vsyncpa [#allocation3], 0
    %11 = vsyncpa [#allocation6], 0
    %12 = vsyncpa [#allocation9], 0
    %13 = vsyncpa [#allocation4], 0
    // Predicated region
    $region2: #{tpu_custom_call.1} parent=1 // pred_check
      _
    $region3: #{tpu_custom_call.1} parent=1 // pred_check_branch
      %15 = sbr.rel (0) target = $region5
    $region4: #{tpu_custom_call.1} parent=1 // pred_region
      %s17 = ssub.s32 128, 128
      %18 = vsyncadd [#allocation3], %s17
      %s20 = sshll.u32 [#allocation2], 4
      %s21 = int_to_ptr.vmem [resolvable:$true] %s20
      %23 = dma.hbm_to_vmem [thread:$0]  %s0, 128, %s21, [#allocation3]
    $region5: #{tpu_custom_call.1} parent=1 // pred_fallthru
      _
    // Predicated region
    $region6: #{tpu_custom_call.1} parent=1 // pred_check
      _
    $region7: #{tpu_custom_call.1} parent=1 // pred_check_branch
      %25 = sbr.rel (0) target = $region9
    $region8: #{tpu_custom_call.1} parent=1 // pred_region
      %s27 = ssub.s32 4096, 4096
      %28 = vsyncadd [#allocation6], %s27
      %s29 = sshll.u32 [#allocation5], 4
      %s30 = int_to_ptr.vmem [resolvable:$true] %s29
      %35 = dma.hbm_to_vmem [thread:$0]  %s1, 4096, %s30, [#allocation6], 256, 256, 16
    $region9: #{tpu_custom_call.1} parent=1 // pred_fallthru
      _
    // Predicated region
    $region10: #{tpu_custom_call.1} parent=1 // pred_check
      _
    $region11: #{tpu_custom_call.1} parent=1 // pred_check_branch
      %37 = sbr.rel (0) target = $region13
    $region12: #{tpu_custom_call.1} parent=1 // pred_region
      %s39 = ssub.s32 4096, 4096
      %40 = vsyncadd [#allocation6], %s39
      %s41 = sshll.u32 [#allocation7], 4
      %s42 = int_to_ptr.vmem [resolvable:$true] %s41
      %47 = dma.hbm_to_vmem [thread:$0]  %s2, 4096, %s42, [#allocation6], 128, 128, 8
    $region13: #{tpu_custom_call.1} parent=1 // pred_fallthru
      _
    // Predicated region
    $region14: #{tpu_custom_call.1} parent=1 // pred_check
      _
    $region15: #{tpu_custom_call.1} parent=1 // pred_check_branch
      %49 = sbr.rel (0) target = $region17
    $region16: #{tpu_custom_call.1} parent=1 // pred_region
      %s51 = ssub.s32 2048, 2048
      %52 = vsyncadd [#allocation9], %s51
      %s53 = sshll.u32 [#allocation8], 4
      %s54 = int_to_ptr.vmem [resolvable:$true] %s53
      %59 = dma.hbm_to_vmem [thread:$0]  %s3, 2048, %s54, [#allocation9], 128, 128, 8
    $region17: #{tpu_custom_call.1} parent=1 // pred_fallthru
      _
    // Predicated region
    $region18: #{tpu_custom_call.1} parent=1 // pred_check
      _
    $region19: #{tpu_custom_call.1} parent=1 // pred_check_branch
      %61 = sbr.rel (0) target = $region21
    $region20: #{tpu_custom_call.1} parent=1 // pred_region
      _
    $region21: #{tpu_custom_call.1} parent=1 // pred_fallthru
      _
    // Predicated region
    $region22: #{tpu_custom_call.1} parent=1 // pred_check
      _
    $region23: #{tpu_custom_call.1} parent=1 // pred_check_branch
      %63 = sbr.rel (0) target = $region25
    $region24: #{tpu_custom_call.1} parent=1 // pred_region
      %64 = dma.done [#allocation3], 128
    $region25: #{tpu_custom_call.1} parent=1 // pred_fallthru
      _
    // Predicated region
    $region26: #{tpu_custom_call.1} parent=1 // pred_check
      _
    $region27: #{tpu_custom_call.1} parent=1 // pred_check_branch
      %66 = sbr.rel (0) target = $region29
    $region28: #{tpu_custom_call.1} parent=1 // pred_region
      %67 = dma.done [#allocation6], 4096
    $region29: #{tpu_custom_call.1} parent=1 // pred_fallthru
      _
    // Predicated region
    $region30: #{tpu_custom_call.1} parent=1 // pred_check
      _
    $region31: #{tpu_custom_call.1} parent=1 // pred_check_branch
      %69 = sbr.rel (0) target = $region33
    $region32: #{tpu_custom_call.1} parent=1 // pred_region
      %70 = dma.done [#allocation6], 4096
    $region33: #{tpu_custom_call.1} parent=1 // pred_fallthru
      _
    // Predicated region
    $region34: #{tpu_custom_call.1} parent=1 // pred_check
      _
    $region35: #{tpu_custom_call.1} parent=1 // pred_check_branch
      %72 = sbr.rel (0) target = $region37
    $region36: #{tpu_custom_call.1} parent=1 // pred_region
      %73 = dma.done [#allocation9], 2048
    $region37: #{tpu_custom_call.1} parent=1 // pred_fallthru
      _
    %v74 = vld [vmem:[#allocation2] sm:$0xff]
    %v75 = vld [vmem:[%s4] sm:$0x77]
    %v76 = vld [vmem:[#allocation5] sm:$0xff]
    %v77 = vld [vmem:[#allocation5 + $0x8] sm:$0xff]
    %v78 = vld [vmem:[#allocation5 + $0x10] sm:$0xff]
    %v79 = vld [vmem:[#allocation5 + $0x18] sm:$0xff]
    %v80 = vld [vmem:[#allocation5 + $0x20] sm:$0xff]
    %v81 = vld [vmem:[#allocation5 + $0x28] sm:$0xff]
    %v82 = vld [vmem:[#allocation5 + $0x30] sm:$0xff]
    %v83 = vld [vmem:[#allocation5 + $0x38] sm:$0xff]
    %v84 = vld [vmem:[#allocation5 + $0x40] sm:$0xff]
    %v85 = vld [vmem:[#allocation5 + $0x48] sm:$0xff]
    %v86 = vld [vmem:[#allocation5 + $0x50] sm:$0xff]
    %v87 = vld [vmem:[#allocation5 + $0x58] sm:$0xff]
    %v88 = vld [vmem:[#allocation5 + $0x60] sm:$0xff]
    %v89 = vld [vmem:[#allocation5 + $0x68] sm:$0xff]
    %v90 = vld [vmem:[#allocation5 + $0x70] sm:$0xff]
    %v91 = vld [vmem:[#allocation5 + $0x78] sm:$0xff]
    %v92 = vld [vmem:[#allocation5 + $0x80] sm:$0xff]
    %v93 = vld [vmem:[#allocation5 + $0x88] sm:$0xff]
    %v94 = vld [vmem:[#allocation5 + $0x90] sm:$0xff]
    %v95 = vld [vmem:[#allocation5 + $0x98] sm:$0xff]
    %v96 = vld [vmem:[#allocation5 + $0xa0] sm:$0xff]
    %v97 = vld [vmem:[#allocation5 + $0xa8] sm:$0xff]
    %v98 = vld [vmem:[#allocation5 + $0xb0] sm:$0xff]
    %v99 = vld [vmem:[#allocation5 + $0xb8] sm:$0xff]
    %v100 = vld [vmem:[#allocation5 + $0xc0] sm:$0xff]
    %v101 = vld [vmem:[#allocation5 + $0xc8] sm:$0xff]
    %v102 = vld [vmem:[#allocation5 + $0xd0] sm:$0xff]
    %v103 = vld [vmem:[#allocation5 + $0xd8] sm:$0xff]
    %v104 = vld [vmem:[#allocation5 + $0xe0] sm:$0xff]
    %v105 = vld [vmem:[#allocation5 + $0xe8] sm:$0xff]
    %v106 = vld [vmem:[#allocation5 + $0xf0] sm:$0xff]
    %v107 = vld [vmem:[#allocation5 + $0xf8] sm:$0xff]
    %v109 = vlaneseq
    %v110 = vshrl.u32 %v109, 7
    %v111 = vsub.s32 0, %v110
    %v112 = vrot.slane %v75, %v111
    %v113 = vlaneseq
    %v114 = vshrl.u32 %v113, 7
    %v115 = vsub.s32 4, %v114
    %v116 = vrot.slane %v75, %v115
    %v119 = vlaneseq
    %v120 = vshrl.u32 %v119, 7
    %v121 = vsub.s32 0, %v120
    %v122 = vrot.slane %v112, %v121
    %v123 = vlaneseq
    %v124 = vshrl.u32 %v123, 7
    %v125 = vsub.s32 0, %v124
    %v126 = vrot.slane %v116, %v125
    %127 = vmatprep.subr.mxu0 %v77
    %128 = vmatpush1.msra.mxu0 %v76
    %129 = vmatprep.subr.mxu0 %v79
    %130 = vmatpush1.msra.mxu0 %v78
    %131 = vmatprep.subr.mxu0 %v81
    %132 = vmatpush1.msra.mxu0 %v80
    %133 = vmatprep.subr.mxu0 %v83
    %134 = vmatpush1.msra.mxu0 %v82
    %135 = vmatprep.subr.mxu0 %v85
    %136 = vmatpush1.msra.mxu0 %v84
    %137 = vmatprep.subr.mxu0 %v87
    %138 = vmatpush1.msra.mxu0 %v86
    %139 = vmatprep.subr.mxu0 %v89
    %140 = vmatpush1.msra.mxu0 %v88
    %141 = vmatprep.subr.mxu0 %v91
    %142 = vmatpush1.msra.mxu0 %v90
    %143 = vmatprep.subr.mxu0 %v93
    %144 = vmatpush1.msra.mxu0 %v92
    %145 = vmatprep.subr.mxu0 %v95
    %146 = vmatpush1.msra.mxu0 %v94
    %147 = vmatprep.subr.mxu0 %v97
    %148 = vmatpush1.msra.mxu0 %v96
    %149 = vmatprep.subr.mxu0 %v99
    %150 = vmatpush1.msra.mxu0 %v98
    %151 = vmatprep.subr.mxu0 %v101
    %152 = vmatpush1.msra.mxu0 %v100
    %153 = vmatprep.subr.mxu0 %v103
    %154 = vmatpush1.msra.mxu0 %v102
    %155 = vmatprep.subr.mxu0 %v105
    %156 = vmatpush1.msra.mxu0 %v104
    %157 = vmatprep.subr.mxu0 %v107
    %158 = vmatpush1.msra.mxu0 %v106
    %159 = vmatprep.subr.mxu0 0.0
    %160 = vmatpush1.msra.mxu0 0.0
    %161 = vmatprep.subr.mxu0 0.0
    %162 = vmatpush1.msra.mxu0 0.0
    %163 = vmatprep.subr.mxu0 0.0
    %164 = vmatpush1.msra.mxu0 0.0
    %165 = vmatprep.subr.mxu0 0.0
    %166 = vmatpush1.msra.mxu0 0.0
    %167 = vmatprep.subr.mxu0 0.0
    %168 = vmatpush1.msra.mxu0 0.0
    %169 = vmatprep.subr.mxu0 0.0
    %170 = vmatpush1.msra.mxu0 0.0
    %171 = vmatprep.subr.mxu0 0.0
    %172 = vmatpush1.msra.mxu0 0.0
    %173 = vmatprep.subr.mxu0 0.0
    %174 = vmatpush1.msra.mxu0 0.0
    %175 = vmatprep.subr.mxu0 0.0
    %176 = vmatpush1.msra.mxu0 0.0
    %177 = vmatprep.subr.mxu0 0.0
    %178 = vmatpush1.msra.mxu0 0.0
    %179 = vmatprep.subr.mxu0 0.0
    %180 = vmatpush1.msra.mxu0 0.0
    %181 = vmatprep.subr.mxu0 0.0
    %182 = vmatpush1.msra.mxu0 0.0
    %183 = vmatprep.subr.mxu0 0.0
    %184 = vmatpush1.msra.mxu0 0.0
    %185 = vmatprep.subr.mxu0 0.0
    %186 = vmatpush1.msra.mxu0 0.0
    %187 = vmatprep.subr.mxu0 0.0
    %188 = vmatpush1.msra.mxu0 0.0
    %189 = vmatprep.subr.mxu0 0.0
    %190 = vmatpush1.msra.mxu0 0.0
    %191 = vmatprep.mubr.f32.mxu0 0.0
    %192 = vmatmul.mubr.f32.gmra.mrb[0].mxu0 %v74
    %v193 = vpop.f32.mrb[0].mxu0
    %v194 = vadd.f32 %v122, %v193
    %v195 = vpop.f32.mrb[0].mxu0
    %v196 = vadd.f32 %v126, %v195
    %197 = vdwg.mxu0
    %v198 = vmax.f32 %v194, 0.0
    %v199 = vmax.f32 %v196, 0.0
    %v200 = vld [vmem:[#allocation7] sm:$0xff]
    %v201 = vld [vmem:[#allocation7 + $0x8] sm:$0xff]
    %v202 = vld [vmem:[#allocation7 + $0x10] sm:$0xff]
    %v203 = vld [vmem:[#allocation7 + $0x18] sm:$0xff]
    %v204 = vld [vmem:[#allocation7 + $0x20] sm:$0xff]
    %v205 = vld [vmem:[#allocation7 + $0x28] sm:$0xff]
    %v206 = vld [vmem:[#allocation7 + $0x30] sm:$0xff]
    %v207 = vld [vmem:[#allocation7 + $0x38] sm:$0xff]
    %v208 = vld [vmem:[#allocation7 + $0x40] sm:$0xff]
    %v209 = vld [vmem:[#allocation7 + $0x48] sm:$0xff]
    %v210 = vld [vmem:[#allocation7 + $0x50] sm:$0xff]
    %v211 = vld [vmem:[#allocation7 + $0x58] sm:$0xff]
    %v212 = vld [vmem:[#allocation7 + $0x60] sm:$0xff]
    %v213 = vld [vmem:[#allocation7 + $0x68] sm:$0xff]
    %v214 = vld [vmem:[#allocation7 + $0x70] sm:$0xff]
    %v215 = vld [vmem:[#allocation7 + $0x78] sm:$0xff]
    %v216 = vld [vmem:[#allocation7 + $0x80] sm:$0xff]
    %v217 = vld [vmem:[#allocation7 + $0x88] sm:$0xff]
    %v218 = vld [vmem:[#allocation7 + $0x90] sm:$0xff]
    %v219 = vld [vmem:[#allocation7 + $0x98] sm:$0xff]
    %v220 = vld [vmem:[#allocation7 + $0xa0] sm:$0xff]
    %v221 = vld [vmem:[#allocation7 + $0xa8] sm:$0xff]
    %v222 = vld [vmem:[#allocation7 + $0xb0] sm:$0xff]
    %v223 = vld [vmem:[#allocation7 + $0xb8] sm:$0xff]
    %v224 = vld [vmem:[#allocation7 + $0xc0] sm:$0xff]
    %v225 = vld [vmem:[#allocation7 + $0xc8] sm:$0xff]
    %v226 = vld [vmem:[#allocation7 + $0xd0] sm:$0xff]
    %v227 = vld [vmem:[#allocation7 + $0xd8] sm:$0xff]
    %v228 = vld [vmem:[#allocation7 + $0xe0] sm:$0xff]
    %v229 = vld [vmem:[#allocation7 + $0xe8] sm:$0xff]
    %v230 = vld [vmem:[#allocation7 + $0xf0] sm:$0xff]
    %v231 = vld [vmem:[#allocation7 + $0xf8] sm:$0xff]
    %v232 = vlaneseq
    %v233 = vshrl.u32 %v232, 7
    %v234 = vsub.s32 1, %v233
    %v235 = vrot.slane %v75, %v234
    %236 = vmatprep.subr.mxu0 0.0
    %237 = vmatpush1.msra.mxu0 %v200
    %238 = vmatprep.subr.mxu0 0.0
    %239 = vmatpush1.msra.mxu0 %v201
    %240 = vmatprep.subr.mxu0 0.0
    %241 = vmatpush1.msra.mxu0 %v202
    %242 = vmatprep.subr.mxu0 0.0
    %243 = vmatpush1.msra.mxu0 %v203
    %244 = vmatprep.subr.mxu0 0.0
    %245 = vmatpush1.msra.mxu0 %v204
    %246 = vmatprep.subr.mxu0 0.0
    %247 = vmatpush1.msra.mxu0 %v205
    %248 = vmatprep.subr.mxu0 0.0
    %249 = vmatpush1.msra.mxu0 %v206
    %250 = vmatprep.subr.mxu0 0.0
    %251 = vmatpush1.msra.mxu0 %v207
    %252 = vmatprep.subr.mxu0 0.0
    %253 = vmatpush1.msra.mxu0 %v208
    %254 = vmatprep.subr.mxu0 0.0
    %255 = vmatpush1.msra.mxu0 %v209
    %256 = vmatprep.subr.mxu0 0.0
    %257 = vmatpush1.msra.mxu0 %v210
    %258 = vmatprep.subr.mxu0 0.0
    %259 = vmatpush1.msra.mxu0 %v211
    %260 = vmatprep.subr.mxu0 0.0
    %261 = vmatpush1.msra.mxu0 %v212
    %262 = vmatprep.subr.mxu0 0.0
    %263 = vmatpush1.msra.mxu0 %v213
    %264 = vmatprep.subr.mxu0 0.0
    %265 = vmatpush1.msra.mxu0 %v214
    %266 = vmatprep.subr.mxu0 0.0
    %267 = vmatpush1.msra.mxu0 %v215
    %268 = vmatprep.subr.mxu0 0.0
    %269 = vmatpush1.msra.mxu0 %v216
    %270 = vmatprep.subr.mxu0 0.0
    %271 = vmatpush1.msra.mxu0 %v217
    %272 = vmatprep.subr.mxu0 0.0
    %273 = vmatpush1.msra.mxu0 %v218
    %274 = vmatprep.subr.mxu0 0.0
    %275 = vmatpush1.msra.mxu0 %v219
    %276 = vmatprep.subr.mxu0 0.0
    %277 = vmatpush1.msra.mxu0 %v220
    %278 = vmatprep.subr.mxu0 0.0
    %279 = vmatpush1.msra.mxu0 %v221
    %280 = vmatprep.subr.mxu0 0.0
    %281 = vmatpush1.msra.mxu0 %v222
    %282 = vmatprep.subr.mxu0 0.0
    %283 = vmatpush1.msra.mxu0 %v223
    %284 = vmatprep.subr.mxu0 0.0
    %285 = vmatpush1.msra.mxu0 %v224
    %286 = vmatprep.subr.mxu0 0.0
    %287 = vmatpush1.msra.mxu0 %v225
    %288 = vmatprep.subr.mxu0 0.0
    %289 = vmatpush1.msra.mxu0 %v226
    %290 = vmatprep.subr.mxu0 0.0
    %291 = vmatpush1.msra.mxu0 %v227
    %292 = vmatprep.subr.mxu0 0.0
    %293 = vmatpush1.msra.mxu0 %v228
    %294 = vmatprep.subr.mxu0 0.0
    %295 = vmatpush1.msra.mxu0 %v229
    %296 = vmatprep.subr.mxu0 0.0
    %297 = vmatpush1.msra.mxu0 %v230
    %298 = vmatprep.subr.mxu0 0.0
    %299 = vmatpush1.msra.mxu0 %v231
    %300 = vmatprep.mubr.f32.mxu0 %v199
    %301 = vmatmul.mubr.f32.gmra.mrb[0].mxu0 %v198
    %v302 = vpop.f32.mrb[0].mxu0
    %v303 = vadd.f32 %v235, %v302
    %v304 = vpop.f32.mrb[0].mxu0
    %305 = vdwg.mxu0
    %v306 = vmax.f32 %v303, 0.0
    %v307 = vld [vmem:[#allocation8] sm:$0xff]
    %v308 = vld [vmem:[#allocation8 + $0x8] sm:$0xff]
    %v309 = vld [vmem:[#allocation8 + $0x10] sm:$0xff]
    %v310 = vld [vmem:[#allocation8 + $0x18] sm:$0xff]
    %v311 = vld [vmem:[#allocation8 + $0x20] sm:$0xff]
    %v312 = vld [vmem:[#allocation8 + $0x28] sm:$0xff]
    %v313 = vld [vmem:[#allocation8 + $0x30] sm:$0xff]
    %v314 = vld [vmem:[#allocation8 + $0x38] sm:$0xff]
    %v315 = vld [vmem:[#allocation8 + $0x40] sm:$0xff]
    %v316 = vld [vmem:[#allocation8 + $0x48] sm:$0xff]
    %v317 = vld [vmem:[#allocation8 + $0x50] sm:$0xff]
    %v318 = vld [vmem:[#allocation8 + $0x58] sm:$0xff]
    %v319 = vld [vmem:[#allocation8 + $0x60] sm:$0xff]
    %v320 = vld [vmem:[#allocation8 + $0x68] sm:$0xff]
    %v321 = vld [vmem:[#allocation8 + $0x70] sm:$0xff]
    %v322 = vld [vmem:[#allocation8 + $0x78] sm:$0xff]
    %v323 = vlaneseq
    %v324 = vshrl.u32 %v323, 7
    %v325 = vsub.s32 2, %v324
    %v326 = vrot.slane %v75, %v325
    %327 = vmatprep.subr.mxu0 0.0
    %328 = vmatpush1.msra.mxu0 %v307
    %329 = vmatprep.subr.mxu0 0.0
    %330 = vmatpush1.msra.mxu0 %v308
    %331 = vmatprep.subr.mxu0 0.0
    %332 = vmatpush1.msra.mxu0 %v309
    %333 = vmatprep.subr.mxu0 0.0
    %334 = vmatpush1.msra.mxu0 %v310
    %335 = vmatprep.subr.mxu0 0.0
    %336 = vmatpush1.msra.mxu0 %v311
    %337 = vmatprep.subr.mxu0 0.0
    %338 = vmatpush1.msra.mxu0 %v312
    %339 = vmatprep.subr.mxu0 0.0
    %340 = vmatpush1.msra.mxu0 %v313
    %341 = vmatprep.subr.mxu0 0.0
    %342 = vmatpush1.msra.mxu0 %v314
    %343 = vmatprep.subr.mxu0 0.0
    %344 = vmatpush1.msra.mxu0 %v315
    %345 = vmatprep.subr.mxu0 0.0
    %346 = vmatpush1.msra.mxu0 %v316
    %347 = vmatprep.subr.mxu0 0.0
    %348 = vmatpush1.msra.mxu0 %v317
    %349 = vmatprep.subr.mxu0 0.0
    %350 = vmatpush1.msra.mxu0 %v318
    %351 = vmatprep.subr.mxu0 0.0
    %352 = vmatpush1.msra.mxu0 %v319
    %353 = vmatprep.subr.mxu0 0.0
    %354 = vmatpush1.msra.mxu0 %v320
    %355 = vmatprep.subr.mxu0 0.0
    %356 = vmatpush1.msra.mxu0 %v321
    %357 = vmatprep.subr.mxu0 0.0
    %358 = vmatpush1.msra.mxu0 %v322
    %359 = vmatprep.subr.mxu0 0.0
    %360 = vmatpush1.msra.mxu0 0.0
    %361 = vmatprep.subr.mxu0 0.0
    %362 = vmatpush1.msra.mxu0 0.0
    %363 = vmatprep.subr.mxu0 0.0
    %364 = vmatpush1.msra.mxu0 0.0
    %365 = vmatprep.subr.mxu0 0.0
    %366 = vmatpush1.msra.mxu0 0.0
    %367 = vmatprep.subr.mxu0 0.0
    %368 = vmatpush1.msra.mxu0 0.0
    %369 = vmatprep.subr.mxu0 0.0
    %370 = vmatpush1.msra.mxu0 0.0
    %371 = vmatprep.subr.mxu0 0.0
    %372 = vmatpush1.msra.mxu0 0.0
    %373 = vmatprep.subr.mxu0 0.0
    %374 = vmatpush1.msra.mxu0 0.0
    %375 = vmatprep.subr.mxu0 0.0
    %376 = vmatpush1.msra.mxu0 0.0
    %377 = vmatprep.subr.mxu0 0.0
    %378 = vmatpush1.msra.mxu0 0.0
    %379 = vmatprep.subr.mxu0 0.0
    %380 = vmatpush1.msra.mxu0 0.0
    %381 = vmatprep.subr.mxu0 0.0
    %382 = vmatpush1.msra.mxu0 0.0
    %383 = vmatprep.subr.mxu0 0.0
    %384 = vmatpush1.msra.mxu0 0.0
    %385 = vmatprep.subr.mxu0 0.0
    %386 = vmatpush1.msra.mxu0 0.0
    %387 = vmatprep.subr.mxu0 0.0
    %388 = vmatpush1.msra.mxu0 0.0
    %389 = vmatprep.subr.mxu0 0.0
    %390 = vmatpush1.msra.mxu0 0.0
    %391 = vmatprep.mubr.f32.mxu0 0.0
    %392 = vmatmul.mubr.f32.gmra.mrb[0].mxu0 %v306
    %v393 = vpop.f32.mrb[0].mxu0
    %v394 = vadd.f32 %v326, %v393
    %v395 = vpop.f32.mrb[0].mxu0
    %396 = vdwg.mxu0
    %v397 = vlaneseq
    %v398 = vand.u32 %v397, 127
    %vm399 = vcmp.lt.s32.totalorder %v398, 8
    %v400 = vsel %vm399, %v394, -inf
    %401 = vmax.xlane.f32.xlu0 %v400
    %v402 = vpop.xlane.xlu0 %401
    %v403 = vsub.f32 %v400, %v402
    %v404 = vmul.f32 %v403, 1.442695
    %v405 = vpow.pop %v404
    %406 = vadd.xlane.f32.xlu0 %v405
    %v407 = vpop.xlane.xlu0 %406
    %v408 = vrcp.pop %v407
    %v409 = vmul.f32 %v407, %v408
    %v410 = vsub.f32 2.0, %v409
    %v411 = vmul.f32 %v408, %v410
    %v412 = vmul.f32 %v405, %v411
    %413 = vst [vmem:[#allocation10] sm:$0xff] %v394
    %414 = vst [vmem:[#allocation10 + $0x8] sm:$0xff] %v412
    // Predicated region
    $region38: #{tpu_custom_call.1} parent=1 // pred_check
      _
    $region39: #{tpu_custom_call.1} parent=1 // pred_check_branch
      %416 = sbr.rel (0) target = $region41
    $region40: #{tpu_custom_call.1} parent=1 // pred_region
      %s418 = ssub.s32 256, 256
      %419 = vsyncadd [#allocation4], %s418
      %s421 = sshll.u32 [#allocation10], 4
      %s422 = int_to_ptr.vmem [resolvable:$true] %s421
      %424 = dma.vmem_to_hbm [thread:$0]  %s422, 256, %s5, [#allocation4]
    $region41: #{tpu_custom_call.1} parent=1 // pred_fallthru
      _
    // Predicated region
    $region42: #{tpu_custom_call.1} parent=1 // pred_check
      _
    $region43: #{tpu_custom_call.1} parent=1 // pred_check_branch
      %426 = sbr.rel (0) target = $region45
    $region44: #{tpu_custom_call.1} parent=1 // pred_region
      %427 = dma.done [#allocation4], 256
    $region45: #{tpu_custom_call.1} parent=1 // pred_fallthru
      _
    %428 = vsyncpa [#allocation3], 1
    %429 = vsyncpa [#allocation6], 1
    %430 = vsyncpa [#allocation9], 1
    %431 = vsyncpa [#allocation4], 1

</llo_original>
